<compile_context>
chip_gen: v7x
topology: tpu7x:2x2x1
jax: 0.10.0
libtpu: 0.0.40
codegen_flags: <defaults>
</compile_context>

<pallas_src>
import jax
import jax.numpy as jnp
from jax.experimental import pallas as pl
from jax.experimental.pallas import tpu as pltpu


def _round_up(x, m):
    return ((x + m - 1) // m) * m


def gated_attention_kernel(x_ref, wl_ref, wg_ref, bl_ref, bg_ref, out_ref):
    # x_ref:   (TM, D)   bf16 token tile
    # wl_ref:  (D, TN)   bf16 linear-weight column block
    # wg_ref:  (D, TN)   bf16 gate-weight column block (same columns as wl)
    # bl_ref:  (1, TN)   f32 linear bias block
    # bg_ref:  (1, TN)   f32 gate bias block
    # out_ref: (TM, TN)  gated output block
    x = x_ref[...]
    z_lin = jnp.dot(x, wl_ref[...], preferred_element_type=jnp.float32) + bl_ref[...]
    z_gate = jnp.dot(x, wg_ref[...], preferred_element_type=jnp.float32) + bg_ref[...]
    # sigmoid(z) = 0.5 * (tanh(z/2) + 1): one EUP transcendental per element
    # (vs exp + divide), all in f32 (v5e VPU/EUP have no bf16 path anyway).
    s_lin = 0.5 * (jnp.tanh(0.5 * z_lin) + 1.0)
    s_gate = 0.5 * (jnp.tanh(0.5 * z_gate) + 1.0)
    out_ref[...] = (s_lin * s_gate).astype(out_ref.dtype)


def prepare_gated_attention_params(w_lin, b_lin, w_gate, b_gate,
                                   *, tn_max=512, param_dtype=jnp.bfloat16):
    """One-time param prep (NOT per forward): transpose PyTorch (H, D) weights
    to (D, Hp) with Hp lane-dense (multiple of 128 and of the column tile TN),
    cast weights to bf16, keep biases f32 as (1, Hp)."""
    H, D = w_lin.shape
    Hp = _round_up(H, 128)
    TN = Hp if Hp <= tn_max else tn_max          # column tile (multiple of 128)
    Hp = _round_up(Hp, TN)                        # ensure TN divides Hp

    def prep_w(w):  # (H, D) -> (D, Hp) bf16
        wt = jnp.transpose(w)
        if Hp != H:
            wt = jnp.pad(wt, ((0, 0), (0, Hp - H)))
        return wt.astype(param_dtype)

    def prep_b(b):  # (H,) -> (1, Hp) f32
        if Hp != H:
            b = jnp.pad(b, (0, Hp - H))
        return b.reshape(1, Hp).astype(jnp.float32)

    return {
        "w_lin": prep_w(w_lin), "w_gate": prep_w(w_gate),
        "b_lin": prep_b(b_lin), "b_gate": prep_b(b_gate),
        "H": H, "Hp": Hp, "TN": TN,
    }


def gated_attention(x, params, *, tm_max=512, out_dtype=jnp.float32):
    """x: (B, S, D) f32; params from prepare_gated_attention_params.
    Returns (B, S, H) in out_dtype (pass jnp.bfloat16 to halve writeback)."""
    B, S, D = x.shape
    H, Hp, TN = params["H"], params["Hp"], params["TN"]
    w_lin, w_gate = params["w_lin"], params["w_gate"]
    b_lin, b_gate = params["b_lin"], params["b_gate"]
    assert w_lin.shape == (D, Hp) and w_gate.shape == (D, Hp)

    M = B * S
    mxu_dtype = w_lin.dtype
    x2d = x.reshape(M, D).astype(mxu_dtype)      # reshape is free; cast feeds MXU bf16

    # Row tile: multiple of 16 (bf16 sublane packing), capped, and split into
    # >= 2 grid steps when there is enough work (megacore + pipeline overlap).
    row_mult = 16 if mxu_dtype == jnp.bfloat16 else 8
    TM = min(tm_max, _round_up(M, row_mult))
    if pl.cdiv(M, TM) < 2 and M > row_mult:
        TM = min(TM, _round_up(pl.cdiv(M, 2), row_mult))

    grid = (pl.cdiv(M, TM), Hp // TN)

    # VMEM budget: double-buffered x / weight / output tiles + f32 intermediates,
    # clamped to the actual chip capacity (v7x: 64 MiB, v5e/v6e: 128 MiB).
    itm_in = jnp.dtype(mxu_dtype).itemsize
    itm_out = jnp.dtype(out_dtype).itemsize
    need = (2 * TM * D * itm_in            # x tile (double-buffered)
            + 2 * 2 * D * TN * itm_in      # two weight column blocks
            + 2 * 2 * TN * 4               # two bias blocks
            + 2 * TM * TN * itm_out        # output tile
            + 4 * TM * TN * 4)             # f32 intermediates (z/s for lin & gate)
    try:
        vmem_cap = pltpu.get_tpu_info().vmem_capacity_bytes
    except Exception:
        vmem_cap = 64 << 20                # conservative (v7x) fallback
    vmem_limit = min(int(1.3 * need) + (4 << 20), vmem_cap - (8 << 20))
    vmem_limit = max(vmem_limit, 16 << 20)

    out2d = pl.pallas_call(
        gated_attention_kernel,
        out_shape=jax.ShapeDtypeStruct((M, Hp), out_dtype),
        grid_spec=pltpu.PrefetchScalarGridSpec(
            num_scalar_prefetch=0,
            grid=grid,
            in_specs=[
                pl.BlockSpec((TM, D), lambda i, j: (i, 0)),   # x tile
                pl.BlockSpec((D, TN), lambda i, j: (0, j)),   # linear weight cols
                pl.BlockSpec((D, TN), lambda i, j: (0, j)),   # gate weight cols
                pl.BlockSpec((1, TN), lambda i, j: (0, j)),   # linear bias
                pl.BlockSpec((1, TN), lambda i, j: (0, j)),   # gate bias
            ],
            out_specs=pl.BlockSpec((TM, TN), lambda i, j: (i, j)),
        ),
        compiler_params=pltpu.CompilerParams(
            dimension_semantics=("parallel", "parallel"),
            vmem_limit_bytes=vmem_limit,
        ),
    )(x2d, w_lin, w_gate, b_lin, b_gate)

    if Hp != H:
        out2d = out2d[:, :H]
    return out2d.reshape(B, S, H)


def reference(x, w_lin, b_lin, w_gate, b_gate):
    # PyTorch nn.Linear layout: weight (H, D), bias (H,)
    lin = jax.nn.sigmoid(x @ w_lin.T + b_lin)
    gate = jax.nn.sigmoid(x @ w_gate.T + b_gate)
    return lin * gate


if __name__ == "__main__":
    # Small shapes consistent with the module's forward: (batch, seq, input_dim)
    B, S, D, H = 2, 8, 32, 32

    key = jax.random.PRNGKey(0)
    kx, kw1, kb1, kw2, kb2 = jax.random.split(key, 5)

    x = jax.random.normal(kx, (B, S, D), dtype=jnp.float32)
    # PyTorch nn.Linear stores weight as (H, D), bias as (H,).
    w_lin = jax.random.normal(kw1, (H, D), dtype=jnp.float32) * 0.1
    b_lin = jax.random.normal(kb1, (H,), dtype=jnp.float32) * 0.1
    w_gate = jax.random.normal(kw2, (H, D), dtype=jnp.float32) * 0.1
    b_gate = jax.random.normal(kb2, (H,), dtype=jnp.float32) * 0.1

    params = prepare_gated_attention_params(w_lin, b_lin, w_gate, b_gate)
    out = gated_attention(x, params)
    out = jax.block_until_ready(out)

    ref = reference(x, w_lin, b_lin, w_gate, b_gate)
    assert out.shape == (B, S, H)
    # bf16 MXU operands -> bf16-level tolerance against the f32 reference.
    err = float(jnp.max(jnp.abs(out - ref)))
    assert jnp.allclose(out, ref, atol=2e-2, rtol=2e-2), f"max abs err {err}"

    print("KERNEL_OK")
</pallas_src>

<mosaic_0001>
module attributes {stable_mosaic.version = 11 : i64} {
  func.func @gated_attention_kernel(%arg0: i32, %arg1: i32, %arg2: memref<16x32xbf16, #tpu.memory_space<vmem>>, %arg3: memref<32x128xbf16, #tpu.memory_space<vmem>>, %arg4: memref<32x128xbf16, #tpu.memory_space<vmem>>, %arg5: memref<1x128xf32, #tpu.memory_space<vmem>>, %arg6: memref<1x128xf32, #tpu.memory_space<vmem>>, %arg7: memref<16x128xf32, #tpu.memory_space<vmem>>) attributes {dimension_semantics = [#tpu.dimension_semantics<parallel>, #tpu.dimension_semantics<parallel>], iteration_bounds = array<i64: 1, 1>, scalar_prefetch = 0 : i64, scratch_operands = 0 : i64, tpu.core_type = #tpu.core_type<tc>, window_params = [{transform_indices = @transform_0, window_bounds = array<i64: 16, 32>}, {transform_indices = @transform_1, window_bounds = array<i64: 32, 128>}, {transform_indices = @transform_2, window_bounds = array<i64: 32, 128>}, {transform_indices = @transform_3, window_bounds = array<i64: 1, 128>}, {transform_indices = @transform_4, window_bounds = array<i64: 1, 128>}, {transform_indices = @transform_5, window_bounds = array<i64: 16, 128>}]} {
    %c0 = arith.constant 0 : index
    %c0_0 = arith.constant 0 : index
    %0 = vector.load %arg2[%c0, %c0_0] : memref<16x32xbf16, #tpu.memory_space<vmem>>, vector<16x32xbf16>
    %c0_1 = arith.constant 0 : index
    %c0_2 = arith.constant 0 : index
    %1 = vector.load %arg3[%c0_1, %c0_2] : memref<32x128xbf16, #tpu.memory_space<vmem>>, vector<32x128xbf16>
    %cst = arith.constant dense<0.000000e+00> : vector<16x128xf32>
    %2 = tpu.matmul %0, %1, %cst {dimension_numbers = #tpu.dot_dimension_numbers<[1], [0], [0], [1], [0, 0, 1, 1], [], []>} : vector<16x32xbf16>, vector<32x128xbf16>, vector<16x128xf32> -> vector<16x128xf32>
    %c0_3 = arith.constant 0 : index
    %c0_4 = arith.constant 0 : index
    %3 = vector.load %arg5[%c0_3, %c0_4] : memref<1x128xf32, #tpu.memory_space<vmem>>, vector<1x128xf32>
    %4 = vector.broadcast %3 : vector<1x128xf32> to vector<16x128xf32>
    %5 = arith.addf %2, %4 : vector<16x128xf32>
    %c0_5 = arith.constant 0 : index
    %c0_6 = arith.constant 0 : index
    %6 = vector.load %arg4[%c0_5, %c0_6] : memref<32x128xbf16, #tpu.memory_space<vmem>>, vector<32x128xbf16>
    %cst_7 = arith.constant dense<0.000000e+00> : vector<16x128xf32>
    %7 = tpu.matmul %0, %6, %cst_7 {dimension_numbers = #tpu.dot_dimension_numbers<[1], [0], [0], [1], [0, 0, 1, 1], [], []>} : vector<16x32xbf16>, vector<32x128xbf16>, vector<16x128xf32> -> vector<16x128xf32>
    %c0_8 = arith.constant 0 : index
    %c0_9 = arith.constant 0 : index
    %8 = vector.load %arg6[%c0_8, %c0_9] : memref<1x128xf32, #tpu.memory_space<vmem>>, vector<1x128xf32>
    %9 = vector.broadcast %8 : vector<1x128xf32> to vector<16x128xf32>
    %10 = arith.addf %7, %9 : vector<16x128xf32>
    %cst_10 = arith.constant 5.000000e-01 : f32
    %11 = vector.broadcast %cst_10 : f32 to vector<16x128xf32>
    %12 = arith.mulf %11, %5 : vector<16x128xf32>
    %13 = math.tanh %12 : vector<16x128xf32>
    %cst_11 = arith.constant 1.000000e+00 : f32
    %14 = vector.broadcast %cst_11 : f32 to vector<16x128xf32>
    %15 = arith.addf %13, %14 : vector<16x128xf32>
    %cst_12 = arith.constant 5.000000e-01 : f32
    %16 = vector.broadcast %cst_12 : f32 to vector<16x128xf32>
    %17 = arith.mulf %16, %15 : vector<16x128xf32>
    %cst_13 = arith.constant 5.000000e-01 : f32
    %18 = vector.broadcast %cst_13 : f32 to vector<16x128xf32>
    %19 = arith.mulf %18, %10 : vector<16x128xf32>
    %20 = math.tanh %19 : vector<16x128xf32>
    %cst_14 = arith.constant 1.000000e+00 : f32
    %21 = vector.broadcast %cst_14 : f32 to vector<16x128xf32>
    %22 = arith.addf %20, %21 : vector<16x128xf32>
    %cst_15 = arith.constant 5.000000e-01 : f32
    %23 = vector.broadcast %cst_15 : f32 to vector<16x128xf32>
    %24 = arith.mulf %23, %22 : vector<16x128xf32>
    %25 = arith.mulf %17, %24 : vector<16x128xf32>
    %c0_16 = arith.constant 0 : index
    %c0_17 = arith.constant 0 : index
    %26 = vector.load %arg7[%c0_16, %c0_17] : memref<16x128xf32, #tpu.memory_space<vmem>>, vector<16x128xf32>
    tpu.vector_store %arg7[%c0_16, %c0_17], %25 {strides = array<i32>} : memref<16x128xf32, #tpu.memory_space<vmem>>, vector<16x128xf32>,
    return
  }
  func.func @transform_0(%arg0: i32, %arg1: i32) -> (i32, i32) {
    %c0_i32 = arith.constant 0 : i32
    %c0_i32_0 = arith.constant 0 : i32
    return %arg0, %c0_i32 : i32, i32
  }
  func.func @transform_1(%arg0: i32, %arg1: i32) -> (i32, i32) {
    %c0_i32 = arith.constant 0 : i32
    %c0_i32_0 = arith.constant 0 : i32
    return %c0_i32, %arg1 : i32, i32
  }
  func.func @transform_2(%arg0: i32, %arg1: i32) -> (i32, i32) {
    %c0_i32 = arith.constant 0 : i32
    %c0_i32_0 = arith.constant 0 : i32
    return %c0_i32, %arg1 : i32, i32
  }
  func.func @transform_3(%arg0: i32, %arg1: i32) -> (i32, i32) {
    %c0_i32 = arith.constant 0 : i32
    %c0_i32_0 = arith.constant 0 : i32
    return %c0_i32, %arg1 : i32, i32
  }
  func.func @transform_4(%arg0: i32, %arg1: i32) -> (i32, i32) {
    %c0_i32 = arith.constant 0 : i32
    %c0_i32_0 = arith.constant 0 : i32
    return %c0_i32, %arg1 : i32, i32
  }
  func.func @transform_5(%arg0: i32, %arg1: i32) -> (i32, i32) {
    %c0_i32 = arith.constant 0 : i32
    return %arg0, %arg1 : i32, i32
  }
}

</mosaic_0001>

<llo_original>
// kernel: tpu_custom_call.1
$region0: #{tpu_custom_call.1}
  #allocation0 [shape = 'u32[]', space=smem, size = 0x4, offset = 0x4, fixed_abs, tag = 'smem constant byte address 0x4 - core index']
  #allocation1 [shape = 'u32[144,128]{1,0:T(1,128)}', space=vmem, size = 0x12000, scoped, tag = 'internal scratch']
  %s0 = inlined_call_operand.hbm [shape: bf16[16,32], index: 0, kind: input, shape index: {}]
  %s1 = inlined_call_operand.hbm [shape: bf16[32,128], index: 1, kind: input, shape index: {}]
  %s2 = inlined_call_operand.hbm [shape: bf16[32,128], index: 2, kind: input, shape index: {}]
  %s3 = inlined_call_operand.vmem [shape: f32[1,128], index: 3, kind: input, shape index: {}]
  %s4 = inlined_call_operand.vmem [shape: f32[1,128], index: 4, kind: input, shape index: {}]
  %s5 = inlined_call_operand.hbm [shape: f32[16,128], index: 5, kind: output, shape index: {}]
  %s6 = sld [smem:[#allocation0]]
  $region42: #{tpu_custom_call.1} parent=0
    _
  %s8 = ssub.s32 1, %s6
  %s9 = scalar_select 0, %s8, %s6
  $region1: #{tpu_custom_call.1} parent=0
    #allocation2 [shape = 'u8[4096]{0}', space=vmem, size = 0x1000, scoped, tag = 'input window, operand 0, single buffered']
    #allocation3 [shape = 's32[1]{0}', space=sflag, size = 0x4, scoped, tag = 'scoped memory for tpu_custom_call.1']
    #allocation4 [shape = 's32[1]{0}', space=sflag, size = 0x4, scoped, tag = 'scoped memory for tpu_custom_call.1']
    #allocation5 [shape = 'u8[8192]{0}', space=vmem, size = 0x2000, scoped, tag = 'input window, operand 1, single buffered']
    #allocation6 [shape = 's32[1]{0}', space=sflag, size = 0x4, scoped, tag = 'scoped memory for tpu_custom_call.1']
    #allocation7 [shape = 'u8[8192]{0}', space=vmem, size = 0x2000, scoped, tag = 'input window, operand 2, single buffered']
    #allocation8 [shape = 'u8[8192]{0}', space=vmem, size = 0x2000, scoped, tag = 'output window, operand 0, single buffered']
    %10 = vsyncpa [#allocation3], 0
    %11 = vsyncpa [#allocation6], 0
    %12 = vsyncpa [#allocation4], 0
    // Predicated region
    $region2: #{tpu_custom_call.1} parent=1 // pred_check
      _
    $region3: #{tpu_custom_call.1} parent=1 // pred_check_branch
      %14 = sbr.rel (0) target = $region5
    $region4: #{tpu_custom_call.1} parent=1 // pred_region
      %s16 = ssub.s32 128, 128
      %17 = vsyncadd [#allocation3], %s16
      %s18 = sshll.u32 [#allocation2], 4
      %s19 = int_to_ptr.vmem [resolvable:$true] %s18
      %24 = dma.hbm_to_vmem [thread:$0]  %s0, 128, %s19, [#allocation3], 64, 64, 4
    $region5: #{tpu_custom_call.1} parent=1 // pred_fallthru
      _
    // Predicated region
    $region6: #{tpu_custom_call.1} parent=1 // pred_check
      _
    $region7: #{tpu_custom_call.1} parent=1 // pred_check_branch
      %26 = sbr.rel (0) target = $region9
    $region8: #{tpu_custom_call.1} parent=1 // pred_region
      %s28 = ssub.s32 256, 256
      %29 = vsyncadd [#allocation6], %s28
      %s30 = sshll.u32 [#allocation5], 4
      %s31 = int_to_ptr.vmem [resolvable:$true] %s30
      %36 = dma.hbm_to_vmem [thread:$0]  %s1, 256, %s31, [#allocation6], 64, 64, 4
    $region9: #{tpu_custom_call.1} parent=1 // pred_fallthru
      _
    // Predicated region
    $region10: #{tpu_custom_call.1} parent=1 // pred_check
      _
    $region11: #{tpu_custom_call.1} parent=1 // pred_check_branch
      %38 = sbr.rel (0) target = $region13
    $region12: #{tpu_custom_call.1} parent=1 // pred_region
      %s40 = ssub.s32 256, 256
      %41 = vsyncadd [#allocation6], %s40
      %s42 = sshll.u32 [#allocation7], 4
      %s43 = int_to_ptr.vmem [resolvable:$true] %s42
      %48 = dma.hbm_to_vmem [thread:$0]  %s2, 256, %s43, [#allocation6], 64, 64, 4
    $region13: #{tpu_custom_call.1} parent=1 // pred_fallthru
      _
    // Predicated region
    $region14: #{tpu_custom_call.1} parent=1 // pred_check
      _
    $region15: #{tpu_custom_call.1} parent=1 // pred_check_branch
      %50 = sbr.rel (0) target = $region17
    $region16: #{tpu_custom_call.1} parent=1 // pred_region
      _
    $region17: #{tpu_custom_call.1} parent=1 // pred_fallthru
      _
    // Predicated region
    $region18: #{tpu_custom_call.1} parent=1 // pred_check
      _
    $region19: #{tpu_custom_call.1} parent=1 // pred_check_branch
      %52 = sbr.rel (0) target = $region21
    $region20: #{tpu_custom_call.1} parent=1 // pred_region
      _
    $region21: #{tpu_custom_call.1} parent=1 // pred_fallthru
      _
    // Predicated region
    $region22: #{tpu_custom_call.1} parent=1 // pred_check
      _
    $region23: #{tpu_custom_call.1} parent=1 // pred_check_branch
      %54 = sbr.rel (0) target = $region25
    $region24: #{tpu_custom_call.1} parent=1 // pred_region
      %55 = dma.done [#allocation3], 128
    $region25: #{tpu_custom_call.1} parent=1 // pred_fallthru
      _
    // Predicated region
    $region26: #{tpu_custom_call.1} parent=1 // pred_check
      _
    $region27: #{tpu_custom_call.1} parent=1 // pred_check_branch
      %57 = sbr.rel (0) target = $region29
    $region28: #{tpu_custom_call.1} parent=1 // pred_region
      %58 = dma.done [#allocation6], 256
    $region29: #{tpu_custom_call.1} parent=1 // pred_fallthru
      _
    // Predicated region
    $region30: #{tpu_custom_call.1} parent=1 // pred_check
      _
    $region31: #{tpu_custom_call.1} parent=1 // pred_check_branch
      %60 = sbr.rel (0) target = $region33
    $region32: #{tpu_custom_call.1} parent=1 // pred_region
      %61 = dma.done [#allocation6], 256
    $region33: #{tpu_custom_call.1} parent=1 // pred_fallthru
      _
    %v63 = vld [vmem:[#allocation2] sm:$0xf]
    %v64 = vld [vmem:[#allocation2 + $0x4] sm:$0xf]
    %v65 = vld [vmem:[#allocation5] sm:$0xf]
    %v66 = vld [vmem:[#allocation5 + $0x4] sm:$0xf]
    %v67 = vld [vmem:[#allocation5 + $0x8] sm:$0xf]
    %v68 = vld [vmem:[#allocation5 + $0xc] sm:$0xf]
    %v69 = vld [vmem:[%s3] sm:$0x1]
    %v71 = vlaneseq
    %v72 = vshrl.u32 %v71, 7
    %v73 = vsub.s32 0, %v72
    %v74 = vrot.slane %v69, %v73
    %v78 = vunpack.c.l.b16 %v63
    %v79 = vunpack.c.l.b16 %v64
    %v80 = vpack.c.b16 %v79, %v78
    %v85 = vunpack.c.l.b16 %v65
    %v86 = vunpack.c.l.b16 %v66
    %v87 = vunpack.c.l.b16 %v67
    %v88 = vunpack.c.l.b16 %v68
    %v89 = vpack.c.b16 %v86, %v85
    %v90 = vpack.c.b16 %v88, %v87
    %vm93 = vcmask 261120
    %v95 = vsel %vm93, %v80, 0
    %97 = vmatprep.subr.bf16.mxu0 0
    %98 = vmatpush1.bf16.msra.mxu0 %v89
    %99 = vmatprep.subr.bf16.mxu0 0
    %100 = vmatpush1.bf16.msra.mxu0 %v90
    %101 = vmatprep.subr.bf16.mxu0 0
    %102 = vmatpush1.bf16.msra.mxu0 0
    %103 = vmatprep.subr.bf16.mxu0 0
    %104 = vmatpush1.bf16.msra.mxu0 0
    %105 = vmatprep.subr.bf16.mxu0 0
    %106 = vmatpush1.bf16.msra.mxu0 0
    %107 = vmatprep.subr.bf16.mxu0 0
    %108 = vmatpush1.bf16.msra.mxu0 0
    %109 = vmatprep.subr.bf16.mxu0 0
    %110 = vmatpush1.bf16.msra.mxu0 0
    %111 = vmatprep.subr.bf16.mxu0 0
    %112 = vmatpush1.bf16.msra.mxu0 0
    %113 = vmatprep.subr.bf16.mxu0 0
    %114 = vmatpush1.bf16.msra.mxu0 0
    %115 = vmatprep.subr.bf16.mxu0 0
    %116 = vmatpush1.bf16.msra.mxu0 0
    %117 = vmatprep.subr.bf16.mxu0 0
    %118 = vmatpush1.bf16.msra.mxu0 0
    %119 = vmatprep.subr.bf16.mxu0 0
    %120 = vmatpush1.bf16.msra.mxu0 0
    %121 = vmatprep.subr.bf16.mxu0 0
    %122 = vmatpush1.bf16.msra.mxu0 0
    %123 = vmatprep.subr.bf16.mxu0 0
    %124 = vmatpush1.bf16.msra.mxu0 0
    %125 = vmatprep.subr.bf16.mxu0 0
    %126 = vmatpush1.bf16.msra.mxu0 0
    %127 = vmatprep.subr.bf16.mxu0 0
    %128 = vmatpush1.bf16.msra.mxu0 0
    %129 = vmatprep.mubr.bf16.mxu0 0
    %130 = vmatmul.mubr.bf16.gmra.mrb[0].mxu0 %v95
    %v131 = vpop.f32.mrb[0].mxu0
    %v132 = vadd.f32 %v74, %v131
    %v133 = vpop.f32.mrb[0].mxu0
    %v134 = vpop.f32.mrb[0].mxu0
    %v135 = vadd.f32 %v74, %v134
    %v136 = vpop.f32.mrb[0].mxu0
    %137 = vdwg.mxu0
    %v138 = vld [vmem:[#allocation7] sm:$0xf]
    %v139 = vld [vmem:[#allocation7 + $0x4] sm:$0xf]
    %v140 = vld [vmem:[#allocation7 + $0x8] sm:$0xf]
    %v141 = vld [vmem:[#allocation7 + $0xc] sm:$0xf]
    %v142 = vld [vmem:[%s4] sm:$0x1]
    %v144 = vlaneseq
    %v145 = vshrl.u32 %v144, 7
    %v146 = vsub.s32 0, %v145
    %v147 = vrot.slane %v142, %v146
    %v153 = vunpack.c.l.b16 %v138
    %v154 = vunpack.c.l.b16 %v139
    %v155 = vunpack.c.l.b16 %v140
    %v156 = vunpack.c.l.b16 %v141
    %v157 = vpack.c.b16 %v154, %v153
    %v158 = vpack.c.b16 %v156, %v155
    %161 = vmatprep.subr.bf16.mxu0 0
    %162 = vmatpush1.bf16.msra.mxu0 %v157
    %163 = vmatprep.subr.bf16.mxu0 0
    %164 = vmatpush1.bf16.msra.mxu0 %v158
    %165 = vmatprep.subr.bf16.mxu0 0
    %166 = vmatpush1.bf16.msra.mxu0 0
    %167 = vmatprep.subr.bf16.mxu0 0
    %168 = vmatpush1.bf16.msra.mxu0 0
    %169 = vmatprep.subr.bf16.mxu0 0
    %170 = vmatpush1.bf16.msra.mxu0 0
    %171 = vmatprep.subr.bf16.mxu0 0
    %172 = vmatpush1.bf16.msra.mxu0 0
    %173 = vmatprep.subr.bf16.mxu0 0
    %174 = vmatpush1.bf16.msra.mxu0 0
    %175 = vmatprep.subr.bf16.mxu0 0
    %176 = vmatpush1.bf16.msra.mxu0 0
    %177 = vmatprep.subr.bf16.mxu0 0
    %178 = vmatpush1.bf16.msra.mxu0 0
    %179 = vmatprep.subr.bf16.mxu0 0
    %180 = vmatpush1.bf16.msra.mxu0 0
    %181 = vmatprep.subr.bf16.mxu0 0
    %182 = vmatpush1.bf16.msra.mxu0 0
    %183 = vmatprep.subr.bf16.mxu0 0
    %184 = vmatpush1.bf16.msra.mxu0 0
    %185 = vmatprep.subr.bf16.mxu0 0
    %186 = vmatpush1.bf16.msra.mxu0 0
    %187 = vmatprep.subr.bf16.mxu0 0
    %188 = vmatpush1.bf16.msra.mxu0 0
    %189 = vmatprep.subr.bf16.mxu0 0
    %190 = vmatpush1.bf16.msra.mxu0 0
    %191 = vmatprep.subr.bf16.mxu0 0
    %192 = vmatpush1.bf16.msra.mxu0 0
    %193 = vmatprep.mubr.bf16.mxu0 0
    %194 = vmatmul.mubr.bf16.gmra.mrb[0].mxu0 %v95
    %v195 = vpop.f32.mrb[0].mxu0
    %v196 = vadd.f32 %v147, %v195
    %v197 = vpop.f32.mrb[0].mxu0
    %v198 = vpop.f32.mrb[0].mxu0
    %v199 = vadd.f32 %v147, %v198
    %v200 = vpop.f32.mrb[0].mxu0
    %201 = vdwg.mxu0
    %v202 = vmul.f32 %v132, 0.5
    %v203 = vmul.f32 %v135, 0.5
    %v204 = vtanh.pop %v202
    %v205 = vtanh.pop %v203
    %v206 = vadd.f32 %v204, 1.0
    %v207 = vadd.f32 %v205, 1.0
    %v208 = vmul.f32 %v206, 0.5
    %v209 = vmul.f32 %v207, 0.5
    %v210 = vmul.f32 %v196, 0.5
    %v211 = vmul.f32 %v199, 0.5
    %v212 = vtanh.pop %v210
    %v213 = vtanh.pop %v211
    %v214 = vadd.f32 %v212, 1.0
    %v215 = vadd.f32 %v213, 1.0
    %v216 = vmul.f32 %v214, 0.5
    %v217 = vmul.f32 %v215, 0.5
    %v218 = vmul.f32 %v208, %v216
    %v219 = vmul.f32 %v209, %v217
    %220 = vst [vmem:[#allocation8] sm:$0xff] %v218
    %221 = vst [vmem:[#allocation8 + $0x8] sm:$0xff] %v219
    // Predicated region
    $region34: #{tpu_custom_call.1} parent=1 // pred_check
      _
    $region35: #{tpu_custom_call.1} parent=1 // pred_check_branch
      %223 = sbr.rel (0) target = $region37
    $region36: #{tpu_custom_call.1} parent=1 // pred_region
      %s225 = ssub.s32 256, 256
      %226 = vsyncadd [#allocation4], %s225
      %s227 = sshll.u32 [#allocation8], 4
      %s228 = int_to_ptr.vmem [resolvable:$true] %s227
      %233 = dma.vmem_to_hbm [thread:$0]  %s228, 256, %s5, [#allocation4], 128, 128, 8
    $region37: #{tpu_custom_call.1} parent=1 // pred_fallthru
      _
    // Predicated region
    $region38: #{tpu_custom_call.1} parent=1 // pred_check
      _
    $region39: #{tpu_custom_call.1} parent=1 // pred_check_branch
      %235 = sbr.rel (0) target = $region41
    $region40: #{tpu_custom_call.1} parent=1 // pred_region
      %236 = dma.done [#allocation4], 256
    $region41: #{tpu_custom_call.1} parent=1 // pred_fallthru
      _
    %237 = vsyncpa [#allocation3], 1
    %238 = vsyncpa [#allocation6], 1
    %239 = vsyncpa [#allocation4], 1

</llo_original>
